<compile_context>
chip_gen: v7x
topology: tpu7x:2x2x1
jax: 0.10.0
libtpu: 0.0.40
codegen_flags: <defaults>
</compile_context>

<pallas_src>
import jax
import jax.numpy as jnp
from jax.experimental import pallas as pl
from jax.experimental.pallas import tpu as pltpu


LANES = 128                 # vreg lane width; hidden1 must equal this
HEAD_ROWS = 8               # rows 0..3: w1_row, b1, b2, b3 (rows 4..7 padding)
W2_OFF = HEAD_ROWS          # rows 8..135  : w2 zero-padded to (128, 128)
W3_OFF = HEAD_ROWS + LANES  # rows 136..263: w3 zero-padded to (128, 128)
SLAB_ROWS = HEAD_ROWS + 2 * LANES  # 264


def mlp_kernel(x_ref, slab_ref, o_ref):
    x = x_ref[...]                                   # (rows, 1)

    w1_row = slab_ref[0:1, :]                        # (1, 128)
    b1     = slab_ref[1:2, :]                        # (1, 128)
    b2     = slab_ref[2:3, :]                        # (1, 128)  zero beyond h2
    b3     = slab_ref[3:4, :]                        # (1, 128)  zero beyond out_features
    w2     = slab_ref[W2_OFF:W2_OFF + LANES, :]      # (128, 128) zero cols beyond h2
    w3     = slab_ref[W3_OFF:W3_OFF + LANES, :]      # (128, 128) zero rows/cols beyond h2/out

    # Layer 1: K=1 contraction == broadcast multiply on the VPU (skip the MXU).
    h1 = jnp.maximum(x * w1_row + b1, 0.0)           # (rows, 128)

    # Layer 2: MXU, f32 accumulate. Padded lanes stay exactly 0 through ReLU.
    h2 = jnp.maximum(
        jnp.dot(h1, w2, preferred_element_type=jnp.float32) + b2, 0.0)   # (rows, 128)

    # Layer 3: MXU against zero-padded w3; lanes >= out_features stay exactly 0.
    o = jnp.dot(h2, w3, preferred_element_type=jnp.float32) + b3         # (rows, 128)

    o_ref[...] = o.astype(o_ref.dtype)


def mlp_forward(x, slab, out_features=3, block_rows=256):
    """x: (B, 1) f32; slab: (SLAB_ROWS, LANES) f32 from pack_params -> (B, out_features)."""
    B = x.shape[0]
    br = min(block_rows, max(8, -(-B // 8) * 8))     # multiple of 8, capped at requested tile
    Bp = -(-B // br) * br                            # pad batch to a multiple of the block
    if Bp != B:
        x = jnp.pad(x, ((0, Bp - B), (0, 0)))
    grid = (Bp // br,)

    flops = 2 * Bp * (LANES + LANES * LANES + LANES * LANES)   # padded l1 + l2 + l3
    bytes_accessed = x.size * 4 + slab.size * 4 + Bp * LANES * 4

    out_padded = pl.pallas_call(
        mlp_kernel,
        out_shape=jax.ShapeDtypeStruct((Bp, LANES), jnp.float32),
        grid=grid,
        in_specs=[
            pl.BlockSpec((br, 1), lambda i: (i, 0)),             # batch rows
            pl.BlockSpec((SLAB_ROWS, LANES), lambda i: (0, 0)),  # weights: same block every step
        ],
        out_specs=pl.BlockSpec((br, LANES), lambda i: (i, 0)),
        compiler_params=pltpu.CompilerParams(dimension_semantics=("parallel",)),
        cost_estimate=pl.CostEstimate(
            flops=flops, transcendentals=0, bytes_accessed=bytes_accessed),
    )(x, slab)

    # Lane-dense store in the kernel; cheap slice back to (B, out_features) here.
    return out_padded[:B, :out_features]


def init_params(key, in_features=1, h1=128, h2=64, out_features=3):
    """Deterministic init mimicking torch.nn.Linear: U(-1/sqrt(fan_in), +1/sqrt(fan_in))."""
    ks = jax.random.split(key, 6)

    def linear(kw, kb, fan_in, fan_out):
        bound = 1.0 / jnp.sqrt(jnp.asarray(fan_in, jnp.float32))
        # stored as (fan_in, fan_out) == W.T relative to PyTorch's (out, in)
        w = jax.random.uniform(kw, (fan_in, fan_out), jnp.float32, -bound, bound)
        b = jax.random.uniform(kb, (1, fan_out), jnp.float32, -bound, bound)
        return w, b

    w1, b1 = linear(ks[0], ks[1], in_features, h1)
    w2, b2 = linear(ks[2], ks[3], h1, h2)
    w3, b3 = linear(ks[4], ks[5], h2, out_features)
    return w1, b1, w2, b2, w3, b3


def pack_params(w1, b1, w2, b2, w3, b3):
    """Host-side (done once): pack ALL params into one (264, 128) f32 slab.

    Row layout:
      0          : w1[0, :]               (in_features == 1, fan_out == h1 == 128)
      1          : b1
      2          : b2  (zero-padded to 128 lanes)
      3          : b3  (zero-padded to 128 lanes)
      4..7       : padding (keeps w2/w3 on 8-row sublane boundaries)
      8..135     : w2 zero-padded to (128, 128)
      136..263   : w3 zero-padded to (128, 128)
    """
    h1 = w1.shape[1]
    h2 = w2.shape[1]
    out_f = w3.shape[1]
    assert w1.shape[0] == 1, "kernel assumes in_features == 1"
    # Layer-1 output feeds the padded (128,128) matmul directly -> h1 must be exactly LANES.
    assert h1 == LANES, f"hidden1 must equal {LANES}"
    assert h2 <= LANES and out_f <= LANES

    slab = jnp.zeros((SLAB_ROWS, LANES), jnp.float32)
    slab = slab.at[0, :h1].set(w1[0, :])
    slab = slab.at[1, :h1].set(b1[0, :])
    slab = slab.at[2, :h2].set(b2[0, :])
    slab = slab.at[3, :out_f].set(b3[0, :])
    slab = slab.at[W2_OFF:W2_OFF + h1, :h2].set(w2)
    slab = slab.at[W3_OFF:W3_OFF + h2, :out_f].set(w3)
    return slab


if __name__ == "__main__":
    key = jax.random.PRNGKey(0)
    k_x, k_p = jax.random.split(key)

    # The original dataset feeds rows of in_features=1 per sample; batch raised
    # to amortize fixed launch/DMA overhead (perf review) and exercise the grid.
    B, in_features = 512, 1
    x = jax.random.normal(k_x, (B, in_features), jnp.float32)

    w1, b1, w2, b2, w3, b3 = init_params(
        k_p, in_features=in_features, h1=128, h2=64, out_features=3)
    slab = pack_params(w1, b1, w2, b2, w3, b3)

    out = mlp_forward(x, slab, out_features=3, block_rows=256)
    jax.block_until_ready(out)

    # Sanity check against a plain-JAX fp32 reference (same math as the module).
    ref = jnp.maximum(x @ w1 + b1, 0.0)
    ref = jnp.maximum(ref @ w2 + b2, 0.0)
    ref = ref @ w3 + b3
    assert out.shape == (B, 3)
    assert jnp.allclose(out, ref, atol=1e-5), "mismatch vs reference"

    print("KERNEL_OK")
</pallas_src>

<mosaic_0001>
module attributes {stable_mosaic.version = 11 : i64} {
  func.func @mlp_kernel(%arg0: i32, %arg1: memref<256x1xf32, #tpu.memory_space<vmem>>, %arg2: memref<264x128xf32, #tpu.memory_space<vmem>>, %arg3: memref<256x128xf32, #tpu.memory_space<vmem>>) attributes {dimension_semantics = [#tpu.dimension_semantics<parallel>], iteration_bounds = array<i64: 2>, scalar_prefetch = 0 : i64, scratch_operands = 0 : i64, tpu.core_type = #tpu.core_type<tc>, window_params = [{transform_indices = @transform_0, window_bounds = array<i64: 256, 1>}, {pipeline_mode = #tpu.pipeline_mode<synchronous>, transform_indices = @transform_1, window_bounds = array<i64: 264, 128>}, {transform_indices = @transform_2, window_bounds = array<i64: 256, 128>}]} {
    %c0 = arith.constant 0 : index
    %c0_0 = arith.constant 0 : index
    %0 = vector.load %arg1[%c0, %c0_0] : memref<256x1xf32, #tpu.memory_space<vmem>>, vector<256x1xf32>
    %c0_1 = arith.constant 0 : index
    %c0_2 = arith.constant 0 : index
    %1 = vector.load %arg2[%c0_1, %c0_2] : memref<264x128xf32, #tpu.memory_space<vmem>>, vector<1x128xf32>
    %c1 = arith.constant 1 : index
    %c0_3 = arith.constant 0 : index
    %2 = vector.load %arg2[%c1, %c0_3] : memref<264x128xf32, #tpu.memory_space<vmem>>, vector<1x128xf32>
    %c2 = arith.constant 2 : index
    %c0_4 = arith.constant 0 : index
    %3 = vector.load %arg2[%c2, %c0_4] : memref<264x128xf32, #tpu.memory_space<vmem>>, vector<1x128xf32>
    %c3 = arith.constant 3 : index
    %c0_5 = arith.constant 0 : index
    %4 = vector.load %arg2[%c3, %c0_5] : memref<264x128xf32, #tpu.memory_space<vmem>>, vector<1x128xf32>
    %c8 = arith.constant 8 : index
    %c0_6 = arith.constant 0 : index
    %5 = vector.load %arg2[%c8, %c0_6] : memref<264x128xf32, #tpu.memory_space<vmem>>, vector<128x128xf32>
    %c136 = arith.constant 136 : index
    %c0_7 = arith.constant 0 : index
    %6 = vector.load %arg2[%c136, %c0_7] : memref<264x128xf32, #tpu.memory_space<vmem>>, vector<128x128xf32>
    %7 = vector.broadcast %0 : vector<256x1xf32> to vector<256x128xf32>
    %8 = vector.broadcast %1 : vector<1x128xf32> to vector<256x128xf32>
    %9 = arith.mulf %7, %8 : vector<256x128xf32>
    %10 = vector.broadcast %2 : vector<1x128xf32> to vector<256x128xf32>
    %11 = arith.addf %9, %10 : vector<256x128xf32>
    %cst = arith.constant 0.000000e+00 : f32
    %12 = vector.broadcast %cst : f32 to vector<256x128xf32>
    %13 = arith.maximumf %11, %12 : vector<256x128xf32>
    %cst_8 = arith.constant dense<0.000000e+00> : vector<256x128xf32>
    %14 = tpu.matmul %13, %5, %cst_8 {dimension_numbers = #tpu.dot_dimension_numbers<[1], [0], [0], [1], [0, 0, 1, 1], [], []>} : vector<256x128xf32>, vector<128x128xf32>, vector<256x128xf32> -> vector<256x128xf32>
    %15 = vector.broadcast %3 : vector<1x128xf32> to vector<256x128xf32>
    %16 = arith.addf %14, %15 : vector<256x128xf32>
    %cst_9 = arith.constant 0.000000e+00 : f32
    %17 = vector.broadcast %cst_9 : f32 to vector<256x128xf32>
    %18 = arith.maximumf %16, %17 : vector<256x128xf32>
    %cst_10 = arith.constant dense<0.000000e+00> : vector<256x128xf32>
    %19 = tpu.matmul %18, %6, %cst_10 {dimension_numbers = #tpu.dot_dimension_numbers<[1], [0], [0], [1], [0, 0, 1, 1], [], []>} : vector<256x128xf32>, vector<128x128xf32>, vector<256x128xf32> -> vector<256x128xf32>
    %20 = vector.broadcast %4 : vector<1x128xf32> to vector<256x128xf32>
    %21 = arith.addf %19, %20 : vector<256x128xf32>
    %c0_11 = arith.constant 0 : index
    %c0_12 = arith.constant 0 : index
    %22 = vector.load %arg3[%c0_11, %c0_12] : memref<256x128xf32, #tpu.memory_space<vmem>>, vector<256x128xf32>
    tpu.vector_store %arg3[%c0_11, %c0_12], %21 {strides = array<i32>} : memref<256x128xf32, #tpu.memory_space<vmem>>, vector<256x128xf32>,
    return
  }
  func.func @transform_0(%arg0: i32) -> (i32, i32) {
    %c0_i32 = arith.constant 0 : i32
    %c0_i32_0 = arith.constant 0 : i32
    return %arg0, %c0_i32 : i32, i32
  }
  func.func @transform_1(%arg0: i32) -> (i32, i32) {
    %c0_i32 = arith.constant 0 : i32
    %c0_i32_0 = arith.constant 0 : i32
    %c0_i32_1 = arith.constant 0 : i32
    return %c0_i32, %c0_i32_0 : i32, i32
  }
  func.func @transform_2(%arg0: i32) -> (i32, i32) {
    %c0_i32 = arith.constant 0 : i32
    %c0_i32_0 = arith.constant 0 : i32
    return %arg0, %c0_i32 : i32, i32
  }
}

</mosaic_0001>

<llo_original>
// kernel: tpu_custom_call.1
$region0: #{tpu_custom_call.1}
  #allocation0 [shape = 'u32[]', space=smem, size = 0x4, offset = 0x4, fixed_abs, tag = 'smem constant byte address 0x4 - core index']
  #allocation1 [shape = 'u32[144,128]{1,0:T(1,128)}', space=vmem, size = 0x12000, scoped, tag = 'internal scratch']
  %s0 = inlined_call_operand.vmem [shape: f32[512,1], index: 0, kind: input, shape index: {}]
  %s1 = inlined_call_operand.vmem [shape: f32[264,128], index: 1, kind: input, shape index: {}]
  %s2 = inlined_call_operand.hbm [shape: f32[512,128], index: 2, kind: output, shape index: {}]
  %s3 = sld [smem:[#allocation0]]
  $region41: #{tpu_custom_call.1} parent=0
    _
  %s5 = ssub.s32 1, %s3
  %s6 = scalar_select 0, %s5, %s3
  $region1: #{tpu_custom_call.1} parent=0
    #allocation2 [shape = 'u8[262144]{0}', space=vmem, size = 0x40000, scoped, tag = 'output window, operand 0']
    #allocation3 [shape = 's32[2]{0}', space=sflag, size = 0x8, scoped, tag = 'scoped memory for tpu_custom_call.1']
    %7 = vsyncpa [#allocation3], 0
    %s8 = scalar_lea.sflag [#allocation3], 1
    %9 = vsyncpa %s8, 0
    loop: start=0, step=1, limit=4
    $region2: #{tpu_custom_call.1} parent=1 // loop_pre_header
      _
    $region3: #{tpu_custom_call.1} parent=1 // loop_header
      %s11 = sphi 0, %s15
      %p12 = scmp.ge.s32.totalorder %s11, 4
      %s21 = sphi 0, %s23
      %s24 = sphi 0, %s21
      %s25 = sphi 0, %s24
      %s41 = sphi 0, %s25
      %s45 = sphi 0, %s45
      %s47 = sphi 0, %s45
      %s48 = sphi 0, %s47
      %s62 = sphi 0, %s48
      %s68 = sphi 0, %s70
      %s71 = sphi 0, %s68
      %s72 = sphi 0, %s71
      %s88 = sphi 0, %s72
    $region4: #{tpu_custom_call.1} parent=1 // loop_header_branch
      %14 = sbr.rel (%p12) target = $region8
    $region5: #{tpu_custom_call.1} parent=1 // loop_body
      %s16 = ssub.s32 %s11, 1
      %s17 = ssub.s32 %s11, 2
      %s18 = sadd.s32 %s11, 1
      %s19 = ssub.s32 %s11, %s18
      %p20 = scmp.eq.s32.totalorder %s19, 0
      %s22 = sadd.s32 %s21, 1
      %s23 = scalar_select %p20, %s21, %s22
      %p26 = pneg %p20
      %p27 = scmp.eq.s32.totalorder %s11, 1
      %p28 = por %p26, %p27
      %p29 = scmp.ne.s32.totalorder %s21, %s24
      %p30 = scmp.eq.s32.totalorder %s11, 0
      %p31 = por %p29, %p30
      %p32 = scmp.ne.s32.totalorder %s21, %s24
      %p33 = scmp.eq.s32.totalorder %s16, 1
      %p34 = por %p32, %p33
      %p35 = scmp.ne.s32.totalorder %s24, %s25
      %p36 = scmp.eq.s32.totalorder %s16, 0
      %p37 = por %p35, %p36
      %p38 = scmp.ne.s32.totalorder %s24, %s25
      %p39 = scmp.eq.s32.totalorder %s17, 1
      %p40 = por %p38, %p39
      %p42 = scmp.ne.s32.totalorder %s25, %s41
      %p43 = scmp.eq.s32.totalorder %s17, 0
      %p44 = por %p42, %p43
      %s46 = sadd.s32 %s45, 1
      %p49 = scmp.eq.s32.totalorder %s11, 1
      %p50 = scmp.ne.s32.totalorder %s45, %s47
      %p51 = scmp.eq.s32.totalorder %s11, 0
      %p52 = por %p50, %p51
      %p53 = scmp.ne.s32.totalorder %s45, %s47
      %p54 = scmp.eq.s32.totalorder %s16, 1
      %p55 = por %p53, %p54
      %p56 = scmp.ne.s32.totalorder %s47, %s48
      %p57 = scmp.eq.s32.totalorder %s16, 0
      %p58 = por %p56, %p57
      %p59 = scmp.ne.s32.totalorder %s47, %s48
      %p60 = scmp.eq.s32.totalorder %s17, 1
      %p61 = por %p59, %p60
      %p63 = scmp.ne.s32.totalorder %s48, %s62
      %p64 = scmp.eq.s32.totalorder %s17, 0
      %p65 = por %p63, %p64
      %s66 = ssub.s32 %s11, %s18
      %p67 = scmp.eq.s32.totalorder %s66, 0
      %s69 = sadd.s32 %s68, 1
      %s70 = scalar_select %p67, %s68, %s69
      %p73 = pneg %p67
      %p74 = scmp.eq.s32.totalorder %s11, 1
      %p75 = por %p73, %p74
      %p76 = scmp.ne.s32.totalorder %s68, %s71
      %p77 = scmp.eq.s32.totalorder %s11, 0
      %p78 = por %p76, %p77
      %p79 = scmp.ne.s32.totalorder %s68, %s71
      %p80 = scmp.eq.s32.totalorder %s16, 1
      %p81 = por %p79, %p80
      %p82 = scmp.ne.s32.totalorder %s71, %s72
      %p83 = scmp.eq.s32.totalorder %s16, 0
      %p84 = por %p82, %p83
      %p85 = scmp.ne.s32.totalorder %s71, %s72
      %p86 = scmp.eq.s32.totalorder %s17, 1
      %p87 = por %p85, %p86
      %p89 = scmp.ne.s32.totalorder %s72, %s88
      %p90 = scmp.eq.s32.totalorder %s17, 0
      %p91 = por %p89, %p90
      %p92 = scmp.le.s32.totalorder 1, %s11
      %p93 = scmp.lt.s32.totalorder %s11, 3
      %p94 = pnand %p92, %p93
      %p95 = pneg %p94
      // Predicated region
      $region9: #{tpu_custom_call.1} parent=5 // pred_check
        _
      $region10: #{tpu_custom_call.1} parent=5 // pred_check_branch
        %97 = sbr.rel (%p94) target = $region12
      $region11: #{tpu_custom_call.1} parent=5 // pred_region
        %s98 = ssub.s32 %s11, 1
        // Predicated region
        $region13: #{tpu_custom_call.1} parent=11 // pred_check
          %p99 = pneg %p58
        $region14: #{tpu_custom_call.1} parent=11 // pred_check_branch
          %101 = sbr.rel (%p99) target = $region16
        $region15: #{tpu_custom_call.1} parent=11 // pred_region
          _
        $region16: #{tpu_custom_call.1} parent=11 // pred_fallthru
          _
      $region12: #{tpu_custom_call.1} parent=5 // pred_fallthru
        _
      %p102 = scmp.lt.s32.totalorder %s11, 2
      // Predicated region
      $region17: #{tpu_custom_call.1} parent=5 // pred_check
        %p103 = pneg %p102
      $region18: #{tpu_custom_call.1} parent=5 // pred_check_branch
        %105 = sbr.rel (%p103) target = $region20
      $region19: #{tpu_custom_call.1} parent=5 // pred_region
        // Predicated region
        $region21: #{tpu_custom_call.1} parent=19 // pred_check
          %p106 = pneg %p31
        $region22: #{tpu_custom_call.1} parent=19 // pred_check_branch
          %108 = sbr.rel (%p106) target = $region24
        $region23: #{tpu_custom_call.1} parent=19 // pred_region
          %s109 = smul.u32 32, %s11
          %p110 = scmp.lt.s32.totalorder %s109, 63
          %s111 = scalar_select %p110, %s109, 63
          %s112 = smul.addr %s111, 8
          %s113 = scalar_lea.vmem %s0, %s112
          %s114 = smul.u32 32, %s11
        $region24: #{tpu_custom_call.1} parent=19 // pred_fallthru
          _
      $region20: #{tpu_custom_call.1} parent=5 // pred_fallthru
        _
      %p115 = scmp.le.s32.totalorder 1, %s11
      %p116 = scmp.lt.s32.totalorder %s11, 3
      %p117 = pnand %p115, %p116
      %p118 = pneg %p117
      // Predicated region
      $region25: #{tpu_custom_call.1} parent=5 // pred_check
        _
      $region26: #{tpu_custom_call.1} parent=5 // pred_check_branch
        %120 = sbr.rel (%p117) target = $region28
      $region27: #{tpu_custom_call.1} parent=5 // pred_region
        %s121 = ssub.s32 %s11, 1
        %s122 = smul.u32 32, %s16
        %p123 = scmp.lt.s32.totalorder %s122, 63
        %s124 = scalar_select %p123, %s122, 63
        %s125 = smul.addr %s124, 8
        %s126 = scalar_lea.vmem %s0, %s125
        %p127 = pneg %p37
        %p128 = pneg %p34
        %p129 = pneg %p58
        %p130 = pneg %p55
        %p131 = pneg %p84
        %p132 = pneg %p81
        %s133 = sand.u32 %s71, 1
        %s134 = scalar_lea.sflag [#allocation3], %s133
        %s135 = sand.u32 %s71, 1
        %s136 = smul.addr %s135, 256
        %s137 = scalar_lea.vmem [#allocation2], %s136
        %s138 = smul.u32 32, %s16
        %p139 = scmp.lt.s32.totalorder %s138, 63
        %s140 = scalar_select %p139, %s138, 63
        %s141 = smul.addr %s140, 8
        %s142 = scalar_lea.vmem %s0, %s141
        %s143 = smul.u32 32, %s16
        %s144 = smul.u32 32, %s16
        %v145 = vld [vmem:[%s142] sm:$0xff]
        %v146 = vld [vmem:[%s142 + $0x8] sm:$0xff]
        %v147 = vld [vmem:[%s142 + $0x10] sm:$0xff]
        %v148 = vld [vmem:[%s142 + $0x18] sm:$0xff]
        %v149 = vld [vmem:[%s142 + $0x20] sm:$0xff]
        %v150 = vld [vmem:[%s142 + $0x28] sm:$0xff]
        %v151 = vld [vmem:[%s142 + $0x30] sm:$0xff]
        %v152 = vld [vmem:[%s142 + $0x38] sm:$0xff]
        %v153 = vld [vmem:[%s142 + $0x40] sm:$0xff]
        %v154 = vld [vmem:[%s142 + $0x48] sm:$0xff]
        %v155 = vld [vmem:[%s142 + $0x50] sm:$0xff]
        %v156 = vld [vmem:[%s142 + $0x58] sm:$0xff]
        %v157 = vld [vmem:[%s142 + $0x60] sm:$0xff]
        %v158 = vld [vmem:[%s142 + $0x68] sm:$0xff]
        %v159 = vld [vmem:[%s142 + $0x70] sm:$0xff]
        %v160 = vld [vmem:[%s142 + $0x78] sm:$0xff]
        %v161 = vld [vmem:[%s142 + $0x80] sm:$0xff]
        %v162 = vld [vmem:[%s142 + $0x88] sm:$0xff]
        %v163 = vld [vmem:[%s142 + $0x90] sm:$0xff]
        %v164 = vld [vmem:[%s142 + $0x98] sm:$0xff]
        %v165 = vld [vmem:[%s142 + $0xa0] sm:$0xff]
        %v166 = vld [vmem:[%s142 + $0xa8] sm:$0xff]
        %v167 = vld [vmem:[%s142 + $0xb0] sm:$0xff]
        %v168 = vld [vmem:[%s142 + $0xb8] sm:$0xff]
        %v169 = vld [vmem:[%s142 + $0xc0] sm:$0xff]
        %v170 = vld [vmem:[%s142 + $0xc8] sm:$0xff]
        %v171 = vld [vmem:[%s142 + $0xd0] sm:$0xff]
        %v172 = vld [vmem:[%s142 + $0xd8] sm:$0xff]
        %v173 = vld [vmem:[%s142 + $0xe0] sm:$0xff]
        %v174 = vld [vmem:[%s142 + $0xe8] sm:$0xff]
        %v175 = vld [vmem:[%s142 + $0xf0] sm:$0xff]
        %v176 = vld [vmem:[%s142 + $0xf8] sm:$0xff]
        %v177 = vld [vmem:[%s1] sm:$0x1]
        %v178 = vld [vmem:[%s1 + $0x1] sm:$0x1]
        %v179 = vld [vmem:[%s1 + $0x2] sm:$0x1]
        %v180 = vld [vmem:[%s1 + $0x3] sm:$0x1]
        %v181 = vld [vmem:[%s1 + $0x8] sm:$0xff]
        %v182 = vld [vmem:[%s1 + $0x10] sm:$0xff]
        %v183 = vld [vmem:[%s1 + $0x18] sm:$0xff]
        %v184 = vld [vmem:[%s1 + $0x20] sm:$0xff]
        %v185 = vld [vmem:[%s1 + $0x28] sm:$0xff]
        %v186 = vld [vmem:[%s1 + $0x30] sm:$0xff]
        %v187 = vld [vmem:[%s1 + $0x38] sm:$0xff]
        %v188 = vld [vmem:[%s1 + $0x40] sm:$0xff]
        %v189 = vld [vmem:[%s1 + $0x48] sm:$0xff]
        %v190 = vld [vmem:[%s1 + $0x50] sm:$0xff]
        %v191 = vld [vmem:[%s1 + $0x58] sm:$0xff]
        %v192 = vld [vmem:[%s1 + $0x60] sm:$0xff]
        %v193 = vld [vmem:[%s1 + $0x68] sm:$0xff]
        %v194 = vld [vmem:[%s1 + $0x70] sm:$0xff]
        %v195 = vld [vmem:[%s1 + $0x78] sm:$0xff]
        %v196 = vld [vmem:[%s1 + $0x80] sm:$0xff]
        %v197 = vld [vmem:[%s1 + $0x88] sm:$0xff]
        %v198 = vld [vmem:[%s1 + $0x90] sm:$0xff]
        %v199 = vld [vmem:[%s1 + $0x98] sm:$0xff]
        %v200 = vld [vmem:[%s1 + $0xa0] sm:$0xff]
        %v201 = vld [vmem:[%s1 + $0xa8] sm:$0xff]
        %v202 = vld [vmem:[%s1 + $0xb0] sm:$0xff]
        %v203 = vld [vmem:[%s1 + $0xb8] sm:$0xff]
        %v204 = vld [vmem:[%s1 + $0xc0] sm:$0xff]
        %v205 = vld [vmem:[%s1 + $0xc8] sm:$0xff]
        %v206 = vld [vmem:[%s1 + $0xd0] sm:$0xff]
        %v207 = vld [vmem:[%s1 + $0xd8] sm:$0xff]
        %v208 = vld [vmem:[%s1 + $0xe0] sm:$0xff]
        %v209 = vld [vmem:[%s1 + $0xe8] sm:$0xff]
        %v210 = vld [vmem:[%s1 + $0xf0] sm:$0xff]
        %v211 = vld [vmem:[%s1 + $0xf8] sm:$0xff]
        %v212 = vld [vmem:[%s1 + $0x100] sm:$0xff]
        %214 = vset.pattern.permute.xlu0 0
        %215 = vperm.xlu0 %214, %v145
        %v216 = vpop.permute.xlu0 %215
        %219 = vset.pattern.permute.xlu0 0
        %220 = vperm.xlu0 %219, %v146
        %v221 = vpop.permute.xlu0 %220
        %224 = vset.pattern.permute.xlu0 0
        %225 = vperm.xlu0 %224, %v147
        %v226 = vpop.permute.xlu0 %225
        %229 = vset.pattern.permute.xlu0 0
        %230 = vperm.xlu0 %229, %v148
        %v231 = vpop.permute.xlu0 %230
        %234 = vset.pattern.permute.xlu0 0
        %235 = vperm.xlu0 %234, %v149
        %v236 = vpop.permute.xlu0 %235
        %239 = vset.pattern.permute.xlu0 0
        %240 = vperm.xlu0 %239, %v150
        %v241 = vpop.permute.xlu0 %240
        %244 = vset.pattern.permute.xlu0 0
        %245 = vperm.xlu0 %244, %v151
        %v246 = vpop.permute.xlu0 %245
        %249 = vset.pattern.permute.xlu0 0
        %250 = vperm.xlu0 %249, %v152
        %v251 = vpop.permute.xlu0 %250
        %254 = vset.pattern.permute.xlu0 0
        %255 = vperm.xlu0 %254, %v153
        %v256 = vpop.permute.xlu0 %255
        %259 = vset.pattern.permute.xlu0 0
        %260 = vperm.xlu0 %259, %v154
        %v261 = vpop.permute.xlu0 %260
        %264 = vset.pattern.permute.xlu0 0
        %265 = vperm.xlu0 %264, %v155
        %v266 = vpop.permute.xlu0 %265
        %269 = vset.pattern.permute.xlu0 0
        %270 = vperm.xlu0 %269, %v156
        %v271 = vpop.permute.xlu0 %270
        %274 = vset.pattern.permute.xlu0 0
        %275 = vperm.xlu0 %274, %v157
        %v276 = vpop.permute.xlu0 %275
        %279 = vset.pattern.permute.xlu0 0
        %280 = vperm.xlu0 %279, %v158
        %v281 = vpop.permute.xlu0 %280
        %284 = vset.pattern.permute.xlu0 0
        %285 = vperm.xlu0 %284, %v159
        %v286 = vpop.permute.xlu0 %285
        %289 = vset.pattern.permute.xlu0 0
        %290 = vperm.xlu0 %289, %v160
        %v291 = vpop.permute.xlu0 %290
        %294 = vset.pattern.permute.xlu0 0
        %295 = vperm.xlu0 %294, %v161
        %v296 = vpop.permute.xlu0 %295
        %299 = vset.pattern.permute.xlu0 0
        %300 = vperm.xlu0 %299, %v162
        %v301 = vpop.permute.xlu0 %300
        %304 = vset.pattern.permute.xlu0 0
        %305 = vperm.xlu0 %304, %v163
        %v306 = vpop.permute.xlu0 %305
        %309 = vset.pattern.permute.xlu0 0
        %310 = vperm.xlu0 %309, %v164
        %v311 = vpop.permute.xlu0 %310
        %314 = vset.pattern.permute.xlu0 0
        %315 = vperm.xlu0 %314, %v165
        %v316 = vpop.permute.xlu0 %315
        %319 = vset.pattern.permute.xlu0 0
        %320 = vperm.xlu0 %319, %v166
        %v321 = vpop.permute.xlu0 %320
        %324 = vset.pattern.permute.xlu0 0
        %325 = vperm.xlu0 %324, %v167
        %v326 = vpop.permute.xlu0 %325
        %329 = vset.pattern.permute.xlu0 0
        %330 = vperm.xlu0 %329, %v168
        %v331 = vpop.permute.xlu0 %330
        %334 = vset.pattern.permute.xlu0 0
        %335 = vperm.xlu0 %334, %v169
        %v336 = vpop.permute.xlu0 %335
        %339 = vset.pattern.permute.xlu0 0
        %340 = vperm.xlu0 %339, %v170
        %v341 = vpop.permute.xlu0 %340
        %344 = vset.pattern.permute.xlu0 0
        %345 = vperm.xlu0 %344, %v171
        %v346 = vpop.permute.xlu0 %345
        %349 = vset.pattern.permute.xlu0 0
        %350 = vperm.xlu0 %349, %v172
        %v351 = vpop.permute.xlu0 %350
        %354 = vset.pattern.permute.xlu0 0
        %355 = vperm.xlu0 %354, %v173
        %v356 = vpop.permute.xlu0 %355
        %359 = vset.pattern.permute.xlu0 0
        %360 = vperm.xlu0 %359, %v174
        %v361 = vpop.permute.xlu0 %360
        %364 = vset.pattern.permute.xlu0 0
        %365 = vperm.xlu0 %364, %v175
        %v366 = vpop.permute.xlu0 %365
        %369 = vset.pattern.permute.xlu0 0
        %370 = vperm.xlu0 %369, %v176
        %v371 = vpop.permute.xlu0 %370
        %v373 = vlaneseq
        %v374 = vshrl.u32 %v373, 7
        %v375 = vsub.s32 0, %v374
        %v376 = vrot.slane %v177, %v375
        %v377 = vmul.f32 %v216, %v376
        %v378 = vmul.f32 %v221, %v376
        %v379 = vmul.f32 %v226, %v376
        %v380 = vmul.f32 %v231, %v376
        %v381 = vmul.f32 %v236, %v376
        %v382 = vmul.f32 %v241, %v376
        %v383 = vmul.f32 %v246, %v376
        %v384 = vmul.f32 %v251, %v376
        %v385 = vmul.f32 %v256, %v376
        %v386 = vmul.f32 %v261, %v376
        %v387 = vmul.f32 %v266, %v376
        %v388 = vmul.f32 %v271, %v376
        %v389 = vmul.f32 %v276, %v376
        %v390 = vmul.f32 %v281, %v376
        %v391 = vmul.f32 %v286, %v376
        %v392 = vmul.f32 %v291, %v376
        %v393 = vmul.f32 %v296, %v376
        %v394 = vmul.f32 %v301, %v376
        %v395 = vmul.f32 %v306, %v376
        %v396 = vmul.f32 %v311, %v376
        %v397 = vmul.f32 %v316, %v376
        %v398 = vmul.f32 %v321, %v376
        %v399 = vmul.f32 %v326, %v376
        %v400 = vmul.f32 %v331, %v376
        %v401 = vmul.f32 %v336, %v376
        %v402 = vmul.f32 %v341, %v376
        %v403 = vmul.f32 %v346, %v376
        %v404 = vmul.f32 %v351, %v376
        %v405 = vmul.f32 %v356, %v376
        %v406 = vmul.f32 %v361, %v376
        %v407 = vmul.f32 %v366, %v376
        %v408 = vmul.f32 %v371, %v376
        %v409 = vlaneseq
        %v410 = vshrl.u32 %v409, 7
        %v411 = vsub.s32 0, %v410
        %v412 = vrot.slane %v178, %v411
        %v413 = vadd.f32 %v377, %v412
        %v414 = vadd.f32 %v378, %v412
        %v415 = vadd.f32 %v379, %v412
        %v416 = vadd.f32 %v380, %v412
        %v417 = vadd.f32 %v381, %v412
        %v418 = vadd.f32 %v382, %v412
        %v419 = vadd.f32 %v383, %v412
        %v420 = vadd.f32 %v384, %v412
        %v421 = vadd.f32 %v385, %v412
        %v422 = vadd.f32 %v386, %v412
        %v423 = vadd.f32 %v387, %v412
        %v424 = vadd.f32 %v388, %v412
        %v425 = vadd.f32 %v389, %v412
        %v426 = vadd.f32 %v390, %v412
        %v427 = vadd.f32 %v391, %v412
        %v428 = vadd.f32 %v392, %v412
        %v429 = vadd.f32 %v393, %v412
        %v430 = vadd.f32 %v394, %v412
        %v431 = vadd.f32 %v395, %v412
        %v432 = vadd.f32 %v396, %v412
        %v433 = vadd.f32 %v397, %v412
        %v434 = vadd.f32 %v398, %v412
        %v435 = vadd.f32 %v399, %v412
        %v436 = vadd.f32 %v400, %v412
        %v437 = vadd.f32 %v401, %v412
        %v438 = vadd.f32 %v402, %v412
        %v439 = vadd.f32 %v403, %v412
        %v440 = vadd.f32 %v404, %v412
        %v441 = vadd.f32 %v405, %v412
        %v442 = vadd.f32 %v406, %v412
        %v443 = vadd.f32 %v407, %v412
        %v444 = vadd.f32 %v408, %v412
        %v445 = vmax.f32 %v413, 0.0
        %v446 = vmax.f32 %v414, 0.0
        %v447 = vmax.f32 %v415, 0.0
        %v448 = vmax.f32 %v416, 0.0
        %v449 = vmax.f32 %v417, 0.0
        %v450 = vmax.f32 %v418, 0.0
        %v451 = vmax.f32 %v419, 0.0
        %v452 = vmax.f32 %v420, 0.0
        %v453 = vmax.f32 %v421, 0.0
        %v454 = vmax.f32 %v422, 0.0
        %v455 = vmax.f32 %v423, 0.0
        %v456 = vmax.f32 %v424, 0.0
        %v457 = vmax.f32 %v425, 0.0
        %v458 = vmax.f32 %v426, 0.0
        %v459 = vmax.f32 %v427, 0.0
        %v460 = vmax.f32 %v428, 0.0
        %v461 = vmax.f32 %v429, 0.0
        %v462 = vmax.f32 %v430, 0.0
        %v463 = vmax.f32 %v431, 0.0
        %v464 = vmax.f32 %v432, 0.0
        %v465 = vmax.f32 %v433, 0.0
        %v466 = vmax.f32 %v434, 0.0
        %v467 = vmax.f32 %v435, 0.0
        %v468 = vmax.f32 %v436, 0.0
        %v469 = vmax.f32 %v437, 0.0
        %v470 = vmax.f32 %v438, 0.0
        %v471 = vmax.f32 %v439, 0.0
        %v472 = vmax.f32 %v440, 0.0
        %v473 = vmax.f32 %v441, 0.0
        %v474 = vmax.f32 %v442, 0.0
        %v475 = vmax.f32 %v443, 0.0
        %v476 = vmax.f32 %v444, 0.0
        %v477 = vlaneseq
        %v478 = vshrl.u32 %v477, 7
        %v479 = vsub.s32 0, %v478
        %v480 = vrot.slane %v179, %v479
        %481 = vmatprep.subr.mxu0 0.0
        %482 = vmatpush1.msra.mxu0 %v181
        %483 = vmatprep.subr.mxu0 0.0
        %484 = vmatpush1.msra.mxu0 %v182
        %485 = vmatprep.subr.mxu0 0.0
        %486 = vmatpush1.msra.mxu0 %v183
        %487 = vmatprep.subr.mxu0 0.0
        %488 = vmatpush1.msra.mxu0 %v184
        %489 = vmatprep.subr.mxu0 0.0
        %490 = vmatpush1.msra.mxu0 %v185
        %491 = vmatprep.subr.mxu0 0.0
        %492 = vmatpush1.msra.mxu0 %v186
        %493 = vmatprep.subr.mxu0 0.0
        %494 = vmatpush1.msra.mxu0 %v187
        %495 = vmatprep.subr.mxu0 0.0
        %496 = vmatpush1.msra.mxu0 %v188
        %497 = vmatprep.subr.mxu0 0.0
        %498 = vmatpush1.msra.mxu0 %v189
        %499 = vmatprep.subr.mxu0 0.0
        %500 = vmatpush1.msra.mxu0 %v190
        %501 = vmatprep.subr.mxu0 0.0
        %502 = vmatpush1.msra.mxu0 %v191
        %503 = vmatprep.subr.mxu0 0.0
        %504 = vmatpush1.msra.mxu0 %v192
        %505 = vmatprep.subr.mxu0 0.0
        %506 = vmatpush1.msra.mxu0 %v193
        %507 = vmatprep.subr.mxu0 0.0
        %508 = vmatpush1.msra.mxu0 %v194
        %509 = vmatprep.subr.mxu0 0.0
        %510 = vmatpush1.msra.mxu0 %v195
        %511 = vmatprep.subr.mxu0 0.0
        %512 = vmatpush1.msra.mxu0 %v196
        %513 = vmatprep.subr.mxu0 0.0
        %514 = vmatpush1.msra.mxu0 0.0
        %515 = vmatprep.subr.mxu0 0.0
        %516 = vmatpush1.msra.mxu0 0.0
        %517 = vmatprep.subr.mxu0 0.0
        %518 = vmatpush1.msra.mxu0 0.0
        %519 = vmatprep.subr.mxu0 0.0
        %520 = vmatpush1.msra.mxu0 0.0
        %521 = vmatprep.subr.mxu0 0.0
        %522 = vmatpush1.msra.mxu0 0.0
        %523 = vmatprep.subr.mxu0 0.0
        %524 = vmatpush1.msra.mxu0 0.0
        %525 = vmatprep.subr.mxu0 0.0
        %526 = vmatpush1.msra.mxu0 0.0
        %527 = vmatprep.subr.mxu0 0.0
        %528 = vmatpush1.msra.mxu0 0.0
        %529 = vmatprep.subr.mxu0 0.0
        %530 = vmatpush1.msra.mxu0 0.0
        %531 = vmatprep.subr.mxu0 0.0
        %532 = vmatpush1.msra.mxu0 0.0
        %533 = vmatprep.subr.mxu0 0.0
        %534 = vmatpush1.msra.mxu0 0.0
        %535 = vmatprep.subr.mxu0 0.0
        %536 = vmatpush1.msra.mxu0 0.0
        %537 = vmatprep.subr.mxu0 0.0
        %538 = vmatpush1.msra.mxu0 0.0
        %539 = vmatprep.subr.mxu0 0.0
        %540 = vmatpush1.msra.mxu0 0.0
        %541 = vmatprep.subr.mxu0 0.0
        %542 = vmatpush1.msra.mxu0 0.0
        %543 = vmatprep.subr.mxu0 0.0
        %544 = vmatpush1.msra.mxu0 0.0
        %545 = vmatprep.mubr.f32.mxu0 0.0
        %546 = vmatmul.mubr.f32.gmra.mrb[0].mxu0 %v445
        %v547 = vpop.f32.mrb[0].mxu0
        %v548 = vadd.f32 %v480, %v547
        %v549 = vpop.f32.mrb[0].mxu0
        %550 = vmatprep.mubr.f32.mxu0 0.0
        %551 = vmatmul.mubr.f32.gmra.mrb[0].mxu0 %v446
        %v552 = vpop.f32.mrb[0].mxu0
        %v553 = vadd.f32 %v480, %v552
        %v554 = vpop.f32.mrb[0].mxu0
        %555 = vmatprep.mubr.f32.mxu0 0.0
        %556 = vmatmul.mubr.f32.gmra.mrb[0].mxu0 %v447
        %v557 = vpop.f32.mrb[0].mxu0
        %v558 = vadd.f32 %v480, %v557
        %v559 = vpop.f32.mrb[0].mxu0
        %560 = vmatprep.mubr.f32.mxu0 0.0
        %561 = vmatmul.mubr.f32.gmra.mrb[0].mxu0 %v448
        %v562 = vpop.f32.mrb[0].mxu0
        %v563 = vadd.f32 %v480, %v562
        %v564 = vpop.f32.mrb[0].mxu0
        %565 = vmatprep.mubr.f32.mxu0 0.0
        %566 = vmatmul.mubr.f32.gmra.mrb[0].mxu0 %v449
        %v567 = vpop.f32.mrb[0].mxu0
        %v568 = vadd.f32 %v480, %v567
        %v569 = vpop.f32.mrb[0].mxu0
        %570 = vmatprep.mubr.f32.mxu0 0.0
        %571 = vmatmul.mubr.f32.gmra.mrb[0].mxu0 %v450
        %v572 = vpop.f32.mrb[0].mxu0
        %v573 = vadd.f32 %v480, %v572
        %v574 = vpop.f32.mrb[0].mxu0
        %575 = vmatprep.mubr.f32.mxu0 0.0
        %576 = vmatmul.mubr.f32.gmra.mrb[0].mxu0 %v451
        %v577 = vpop.f32.mrb[0].mxu0
        %v578 = vadd.f32 %v480, %v577
        %v579 = vpop.f32.mrb[0].mxu0
        %580 = vmatprep.mubr.f32.mxu0 0.0
        %581 = vmatmul.mubr.f32.gmra.mrb[0].mxu0 %v452
        %v582 = vpop.f32.mrb[0].mxu0
        %v583 = vadd.f32 %v480, %v582
        %v584 = vpop.f32.mrb[0].mxu0
        %585 = vmatprep.mubr.f32.mxu0 0.0
        %586 = vmatmul.mubr.f32.gmra.mrb[0].mxu0 %v453
        %v587 = vpop.f32.mrb[0].mxu0
        %v588 = vadd.f32 %v480, %v587
        %v589 = vpop.f32.mrb[0].mxu0
        %590 = vmatprep.mubr.f32.mxu0 0.0
        %591 = vmatmul.mubr.f32.gmra.mrb[0].mxu0 %v454
        %v592 = vpop.f32.mrb[0].mxu0
        %v593 = vadd.f32 %v480, %v592
        %v594 = vpop.f32.mrb[0].mxu0
        %595 = vmatprep.mubr.f32.mxu0 0.0
        %596 = vmatmul.mubr.f32.gmra.mrb[0].mxu0 %v455
        %v597 = vpop.f32.mrb[0].mxu0
        %v598 = vadd.f32 %v480, %v597
        %v599 = vpop.f32.mrb[0].mxu0
        %600 = vmatprep.mubr.f32.mxu0 0.0
        %601 = vmatmul.mubr.f32.gmra.mrb[0].mxu0 %v456
        %v602 = vpop.f32.mrb[0].mxu0
        %v603 = vadd.f32 %v480, %v602
        %v604 = vpop.f32.mrb[0].mxu0
        %605 = vmatprep.mubr.f32.mxu0 0.0
        %606 = vmatmul.mubr.f32.gmra.mrb[0].mxu0 %v457
        %v607 = vpop.f32.mrb[0].mxu0
        %v608 = vadd.f32 %v480, %v607
        %v609 = vpop.f32.mrb[0].mxu0
        %610 = vmatprep.mubr.f32.mxu0 0.0
        %611 = vmatmul.mubr.f32.gmra.mrb[0].mxu0 %v458
        %v612 = vpop.f32.mrb[0].mxu0
        %v613 = vadd.f32 %v480, %v612
        %v614 = vpop.f32.mrb[0].mxu0
        %615 = vmatprep.mubr.f32.mxu0 0.0
        %616 = vmatmul.mubr.f32.gmra.mrb[0].mxu0 %v459
        %v617 = vpop.f32.mrb[0].mxu0
        %v618 = vadd.f32 %v480, %v617
        %v619 = vpop.f32.mrb[0].mxu0
        %620 = vmatprep.mubr.f32.mxu0 0.0
        %621 = vmatmul.mubr.f32.gmra.mrb[0].mxu0 %v460
        %v622 = vpop.f32.mrb[0].mxu0
        %v623 = vadd.f32 %v480, %v622
        %v624 = vpop.f32.mrb[0].mxu0
        %625 = vmatprep.mubr.f32.mxu0 0.0
        %626 = vmatmul.mubr.f32.gmra.mrb[0].mxu0 %v461
        %v627 = vpop.f32.mrb[0].mxu0
        %v628 = vadd.f32 %v480, %v627
        %v629 = vpop.f32.mrb[0].mxu0
        %630 = vmatprep.mubr.f32.mxu0 0.0
        %631 = vmatmul.mubr.f32.gmra.mrb[0].mxu0 %v462
        %v632 = vpop.f32.mrb[0].mxu0
        %v633 = vadd.f32 %v480, %v632
        %v634 = vpop.f32.mrb[0].mxu0
        %635 = vmatprep.mubr.f32.mxu0 0.0
        %636 = vmatmul.mubr.f32.gmra.mrb[0].mxu0 %v463
        %v637 = vpop.f32.mrb[0].mxu0
        %v638 = vadd.f32 %v480, %v637
        %v639 = vpop.f32.mrb[0].mxu0
        %640 = vmatprep.mubr.f32.mxu0 0.0
        %641 = vmatmul.mubr.f32.gmra.mrb[0].mxu0 %v464
        %v642 = vpop.f32.mrb[0].mxu0
        %v643 = vadd.f32 %v480, %v642
        %v644 = vpop.f32.mrb[0].mxu0
        %645 = vmatprep.mubr.f32.mxu0 0.0
        %646 = vmatmul.mubr.f32.gmra.mrb[0].mxu0 %v465
        %v647 = vpop.f32.mrb[0].mxu0
        %v648 = vadd.f32 %v480, %v647
        %v649 = vpop.f32.mrb[0].mxu0
        %650 = vmatprep.mubr.f32.mxu0 0.0
        %651 = vmatmul.mubr.f32.gmra.mrb[0].mxu0 %v466
        %v652 = vpop.f32.mrb[0].mxu0
        %v653 = vadd.f32 %v480, %v652
        %v654 = vpop.f32.mrb[0].mxu0
        %655 = vmatprep.mubr.f32.mxu0 0.0
        %656 = vmatmul.mubr.f32.gmra.mrb[0].mxu0 %v467
        %v657 = vpop.f32.mrb[0].mxu0
        %v658 = vadd.f32 %v480, %v657
        %v659 = vpop.f32.mrb[0].mxu0
        %660 = vmatprep.mubr.f32.mxu0 0.0
        %661 = vmatmul.mubr.f32.gmra.mrb[0].mxu0 %v468
        %v662 = vpop.f32.mrb[0].mxu0
        %v663 = vadd.f32 %v480, %v662
        %v664 = vpop.f32.mrb[0].mxu0
        %665 = vmatprep.mubr.f32.mxu0 0.0
        %666 = vmatmul.mubr.f32.gmra.mrb[0].mxu0 %v469
        %v667 = vpop.f32.mrb[0].mxu0
        %v668 = vadd.f32 %v480, %v667
        %v669 = vpop.f32.mrb[0].mxu0
        %670 = vmatprep.mubr.f32.mxu0 0.0
        %671 = vmatmul.mubr.f32.gmra.mrb[0].mxu0 %v470
        %v672 = vpop.f32.mrb[0].mxu0
        %v673 = vadd.f32 %v480, %v672
        %v674 = vpop.f32.mrb[0].mxu0
        %675 = vmatprep.mubr.f32.mxu0 0.0
        %676 = vmatmul.mubr.f32.gmra.mrb[0].mxu0 %v471
        %v677 = vpop.f32.mrb[0].mxu0
        %v678 = vadd.f32 %v480, %v677
        %v679 = vpop.f32.mrb[0].mxu0
        %680 = vmatprep.mubr.f32.mxu0 0.0
        %681 = vmatmul.mubr.f32.gmra.mrb[0].mxu0 %v472
        %v682 = vpop.f32.mrb[0].mxu0
        %v683 = vadd.f32 %v480, %v682
        %v684 = vpop.f32.mrb[0].mxu0
        %685 = vmatprep.mubr.f32.mxu0 0.0
        %686 = vmatmul.mubr.f32.gmra.mrb[0].mxu0 %v473
        %v687 = vpop.f32.mrb[0].mxu0
        %v688 = vadd.f32 %v480, %v687
        %v689 = vpop.f32.mrb[0].mxu0
        %690 = vmatprep.mubr.f32.mxu0 0.0
        %691 = vmatmul.mubr.f32.gmra.mrb[0].mxu0 %v474
        %v692 = vpop.f32.mrb[0].mxu0
        %v693 = vadd.f32 %v480, %v692
        %v694 = vpop.f32.mrb[0].mxu0
        %695 = vmatprep.mubr.f32.mxu0 0.0
        %696 = vmatmul.mubr.f32.gmra.mrb[0].mxu0 %v475
        %v697 = vpop.f32.mrb[0].mxu0
        %v698 = vadd.f32 %v480, %v697
        %v699 = vpop.f32.mrb[0].mxu0
        %700 = vmatprep.mubr.f32.mxu0 0.0
        %701 = vmatmul.mubr.f32.gmra.mrb[0].mxu0 %v476
        %v702 = vpop.f32.mrb[0].mxu0
        %v703 = vadd.f32 %v480, %v702
        %v704 = vpop.f32.mrb[0].mxu0
        %705 = vdwg.mxu0
        %v706 = vmax.f32 %v548, 0.0
        %v707 = vmax.f32 %v553, 0.0
        %v708 = vmax.f32 %v558, 0.0
        %v709 = vmax.f32 %v563, 0.0
        %v710 = vmax.f32 %v568, 0.0
        %v711 = vmax.f32 %v573, 0.0
        %v712 = vmax.f32 %v578, 0.0
        %v713 = vmax.f32 %v583, 0.0
        %v714 = vmax.f32 %v588, 0.0
        %v715 = vmax.f32 %v593, 0.0
        %v716 = vmax.f32 %v598, 0.0
        %v717 = vmax.f32 %v603, 0.0
        %v718 = vmax.f32 %v608, 0.0
        %v719 = vmax.f32 %v613, 0.0
        %v720 = vmax.f32 %v618, 0.0
        %v721 = vmax.f32 %v623, 0.0
        %v722 = vmax.f32 %v628, 0.0
        %v723 = vmax.f32 %v633, 0.0
        %v724 = vmax.f32 %v638, 0.0
        %v725 = vmax.f32 %v643, 0.0
        %v726 = vmax.f32 %v648, 0.0
        %v727 = vmax.f32 %v653, 0.0
        %v728 = vmax.f32 %v658, 0.0
        %v729 = vmax.f32 %v663, 0.0
        %v730 = vmax.f32 %v668, 0.0
        %v731 = vmax.f32 %v673, 0.0
        %v732 = vmax.f32 %v678, 0.0
        %v733 = vmax.f32 %v683, 0.0
        %v734 = vmax.f32 %v688, 0.0
        %v735 = vmax.f32 %v693, 0.0
        %v736 = vmax.f32 %v698, 0.0
        %v737 = vmax.f32 %v703, 0.0
        %v738 = vlaneseq
        %v739 = vshrl.u32 %v738, 7
        %v740 = vsub.s32 0, %v739
        %v741 = vrot.slane %v180, %v740
        %742 = vmatprep.subr.mxu0 0.0
        %743 = vmatpush1.msra.mxu0 %v197
        %744 = vmatprep.subr.mxu0 0.0
        %745 = vmatpush1.msra.mxu0 %v198
        %746 = vmatprep.subr.mxu0 0.0
        %747 = vmatpush1.msra.mxu0 %v199
        %748 = vmatprep.subr.mxu0 0.0
        %749 = vmatpush1.msra.mxu0 %v200
        %750 = vmatprep.subr.mxu0 0.0
        %751 = vmatpush1.msra.mxu0 %v201
        %752 = vmatprep.subr.mxu0 0.0
        %753 = vmatpush1.msra.mxu0 %v202
        %754 = vmatprep.subr.mxu0 0.0
        %755 = vmatpush1.msra.mxu0 %v203
        %756 = vmatprep.subr.mxu0 0.0
        %757 = vmatpush1.msra.mxu0 %v204
        %758 = vmatprep.subr.mxu0 0.0
        %759 = vmatpush1.msra.mxu0 %v205
        %760 = vmatprep.subr.mxu0 0.0
        %761 = vmatpush1.msra.mxu0 %v206
        %762 = vmatprep.subr.mxu0 0.0
        %763 = vmatpush1.msra.mxu0 %v207
        %764 = vmatprep.subr.mxu0 0.0
        %765 = vmatpush1.msra.mxu0 %v208
        %766 = vmatprep.subr.mxu0 0.0
        %767 = vmatpush1.msra.mxu0 %v209
        %768 = vmatprep.subr.mxu0 0.0
        %769 = vmatpush1.msra.mxu0 %v210
        %770 = vmatprep.subr.mxu0 0.0
        %771 = vmatpush1.msra.mxu0 %v211
        %772 = vmatprep.subr.mxu0 0.0
        %773 = vmatpush1.msra.mxu0 %v212
        %774 = vmatprep.subr.mxu0 0.0
        %775 = vmatpush1.msra.mxu0 0.0
        %776 = vmatprep.subr.mxu0 0.0
        %777 = vmatpush1.msra.mxu0 0.0
        %778 = vmatprep.subr.mxu0 0.0
        %779 = vmatpush1.msra.mxu0 0.0
        %780 = vmatprep.subr.mxu0 0.0
        %781 = vmatpush1.msra.mxu0 0.0
        %782 = vmatprep.subr.mxu0 0.0
        %783 = vmatpush1.msra.mxu0 0.0
        %784 = vmatprep.subr.mxu0 0.0
        %785 = vmatpush1.msra.mxu0 0.0
        %786 = vmatprep.subr.mxu0 0.0
        %787 = vmatpush1.msra.mxu0 0.0
        %788 = vmatprep.subr.mxu0 0.0
        %789 = vmatpush1.msra.mxu0 0.0
        %790 = vmatprep.subr.mxu0 0.0
        %791 = vmatpush1.msra.mxu0 0.0
        %792 = vmatprep.subr.mxu0 0.0
        %793 = vmatpush1.msra.mxu0 0.0
        %794 = vmatprep.subr.mxu0 0.0
        %795 = vmatpush1.msra.mxu0 0.0
        %796 = vmatprep.subr.mxu0 0.0
        %797 = vmatpush1.msra.mxu0 0.0
        %798 = vmatprep.subr.mxu0 0.0
        %799 = vmatpush1.msra.mxu0 0.0
        %800 = vmatprep.subr.mxu0 0.0
        %801 = vmatpush1.msra.mxu0 0.0
        %802 = vmatprep.subr.mxu0 0.0
        %803 = vmatpush1.msra.mxu0 0.0
        %804 = vmatprep.subr.mxu0 0.0
        %805 = vmatpush1.msra.mxu0 0.0
        %806 = vmatprep.mubr.f32.mxu0 0.0
        %807 = vmatmul.mubr.f32.gmra.mrb[0].mxu0 %v706
        %v808 = vpop.f32.mrb[0].mxu0
        %v809 = vadd.f32 %v741, %v808
        %v810 = vpop.f32.mrb[0].mxu0
        %811 = vmatprep.mubr.f32.mxu0 0.0
        %812 = vmatmul.mubr.f32.gmra.mrb[0].mxu0 %v707
        %v813 = vpop.f32.mrb[0].mxu0
        %v814 = vadd.f32 %v741, %v813
        %v815 = vpop.f32.mrb[0].mxu0
        %816 = vmatprep.mubr.f32.mxu0 0.0
        %817 = vmatmul.mubr.f32.gmra.mrb[0].mxu0 %v708
        %v818 = vpop.f32.mrb[0].mxu0
        %v819 = vadd.f32 %v741, %v818
        %v820 = vpop.f32.mrb[0].mxu0
        %821 = vmatprep.mubr.f32.mxu0 0.0
        %822 = vmatmul.mubr.f32.gmra.mrb[0].mxu0 %v709
        %v823 = vpop.f32.mrb[0].mxu0
        %v824 = vadd.f32 %v741, %v823
        %v825 = vpop.f32.mrb[0].mxu0
        %826 = vmatprep.mubr.f32.mxu0 0.0
        %827 = vmatmul.mubr.f32.gmra.mrb[0].mxu0 %v710
        %v828 = vpop.f32.mrb[0].mxu0
        %v829 = vadd.f32 %v741, %v828
        %v830 = vpop.f32.mrb[0].mxu0
        %831 = vmatprep.mubr.f32.mxu0 0.0
        %832 = vmatmul.mubr.f32.gmra.mrb[0].mxu0 %v711
        %v833 = vpop.f32.mrb[0].mxu0
        %v834 = vadd.f32 %v741, %v833
        %v835 = vpop.f32.mrb[0].mxu0
        %836 = vmatprep.mubr.f32.mxu0 0.0
        %837 = vmatmul.mubr.f32.gmra.mrb[0].mxu0 %v712
        %v838 = vpop.f32.mrb[0].mxu0
        %v839 = vadd.f32 %v741, %v838
        %v840 = vpop.f32.mrb[0].mxu0
        %841 = vmatprep.mubr.f32.mxu0 0.0
        %842 = vmatmul.mubr.f32.gmra.mrb[0].mxu0 %v713
        %v843 = vpop.f32.mrb[0].mxu0
        %v844 = vadd.f32 %v741, %v843
        %v845 = vpop.f32.mrb[0].mxu0
        %846 = vmatprep.mubr.f32.mxu0 0.0
        %847 = vmatmul.mubr.f32.gmra.mrb[0].mxu0 %v714
        %v848 = vpop.f32.mrb[0].mxu0
        %v849 = vadd.f32 %v741, %v848
        %v850 = vpop.f32.mrb[0].mxu0
        %851 = vmatprep.mubr.f32.mxu0 0.0
        %852 = vmatmul.mubr.f32.gmra.mrb[0].mxu0 %v715
        %v853 = vpop.f32.mrb[0].mxu0
        %v854 = vadd.f32 %v741, %v853
        %v855 = vpop.f32.mrb[0].mxu0
        %856 = vmatprep.mubr.f32.mxu0 0.0
        %857 = vmatmul.mubr.f32.gmra.mrb[0].mxu0 %v716
        %v858 = vpop.f32.mrb[0].mxu0
        %v859 = vadd.f32 %v741, %v858
        %v860 = vpop.f32.mrb[0].mxu0
        %861 = vmatprep.mubr.f32.mxu0 0.0
        %862 = vmatmul.mubr.f32.gmra.mrb[0].mxu0 %v717
        %v863 = vpop.f32.mrb[0].mxu0
        %v864 = vadd.f32 %v741, %v863
        %v865 = vpop.f32.mrb[0].mxu0
        %866 = vmatprep.mubr.f32.mxu0 0.0
        %867 = vmatmul.mubr.f32.gmra.mrb[0].mxu0 %v718
        %v868 = vpop.f32.mrb[0].mxu0
        %v869 = vadd.f32 %v741, %v868
        %v870 = vpop.f32.mrb[0].mxu0
        %871 = vmatprep.mubr.f32.mxu0 0.0
        %872 = vmatmul.mubr.f32.gmra.mrb[0].mxu0 %v719
        %v873 = vpop.f32.mrb[0].mxu0
        %v874 = vadd.f32 %v741, %v873
        %v875 = vpop.f32.mrb[0].mxu0
        %876 = vmatprep.mubr.f32.mxu0 0.0
        %877 = vmatmul.mubr.f32.gmra.mrb[0].mxu0 %v720
        %v878 = vpop.f32.mrb[0].mxu0
        %v879 = vadd.f32 %v741, %v878
        %v880 = vpop.f32.mrb[0].mxu0
        %881 = vmatprep.mubr.f32.mxu0 0.0
        %882 = vmatmul.mubr.f32.gmra.mrb[0].mxu0 %v721
        %v883 = vpop.f32.mrb[0].mxu0
        %v884 = vadd.f32 %v741, %v883
        %v885 = vpop.f32.mrb[0].mxu0
        %886 = vmatprep.mubr.f32.mxu0 0.0
        %887 = vmatmul.mubr.f32.gmra.mrb[0].mxu0 %v722
        %v888 = vpop.f32.mrb[0].mxu0
        %v889 = vadd.f32 %v741, %v888
        %v890 = vpop.f32.mrb[0].mxu0
        %891 = vmatprep.mubr.f32.mxu0 0.0
        %892 = vmatmul.mubr.f32.gmra.mrb[0].mxu0 %v723
        %v893 = vpop.f32.mrb[0].mxu0
        %v894 = vadd.f32 %v741, %v893
        %v895 = vpop.f32.mrb[0].mxu0
        %896 = vmatprep.mubr.f32.mxu0 0.0
        %897 = vmatmul.mubr.f32.gmra.mrb[0].mxu0 %v724
        %v898 = vpop.f32.mrb[0].mxu0
        %v899 = vadd.f32 %v741, %v898
        %v900 = vpop.f32.mrb[0].mxu0
        %901 = vmatprep.mubr.f32.mxu0 0.0
        %902 = vmatmul.mubr.f32.gmra.mrb[0].mxu0 %v725
        %v903 = vpop.f32.mrb[0].mxu0
        %v904 = vadd.f32 %v741, %v903
        %v905 = vpop.f32.mrb[0].mxu0
        %906 = vmatprep.mubr.f32.mxu0 0.0
        %907 = vmatmul.mubr.f32.gmra.mrb[0].mxu0 %v726
        %v908 = vpop.f32.mrb[0].mxu0
        %v909 = vadd.f32 %v741, %v908
        %v910 = vpop.f32.mrb[0].mxu0
        %911 = vmatprep.mubr.f32.mxu0 0.0
        %912 = vmatmul.mubr.f32.gmra.mrb[0].mxu0 %v727
        %v913 = vpop.f32.mrb[0].mxu0
        %v914 = vadd.f32 %v741, %v913
        %v915 = vpop.f32.mrb[0].mxu0
        %916 = vmatprep.mubr.f32.mxu0 0.0
        %917 = vmatmul.mubr.f32.gmra.mrb[0].mxu0 %v728
        %v918 = vpop.f32.mrb[0].mxu0
        %v919 = vadd.f32 %v741, %v918
        %v920 = vpop.f32.mrb[0].mxu0
        %921 = vmatprep.mubr.f32.mxu0 0.0
        %922 = vmatmul.mubr.f32.gmra.mrb[0].mxu0 %v729
        %v923 = vpop.f32.mrb[0].mxu0
        %v924 = vadd.f32 %v741, %v923
        %v925 = vpop.f32.mrb[0].mxu0
        %926 = vmatprep.mubr.f32.mxu0 0.0
        %927 = vmatmul.mubr.f32.gmra.mrb[0].mxu0 %v730
        %v928 = vpop.f32.mrb[0].mxu0
        %v929 = vadd.f32 %v741, %v928
        %v930 = vpop.f32.mrb[0].mxu0
        %931 = vmatprep.mubr.f32.mxu0 0.0
        %932 = vmatmul.mubr.f32.gmra.mrb[0].mxu0 %v731
        %v933 = vpop.f32.mrb[0].mxu0
        %v934 = vadd.f32 %v741, %v933
        %v935 = vpop.f32.mrb[0].mxu0
        %936 = vmatprep.mubr.f32.mxu0 0.0
        %937 = vmatmul.mubr.f32.gmra.mrb[0].mxu0 %v732
        %v938 = vpop.f32.mrb[0].mxu0
        %v939 = vadd.f32 %v741, %v938
        %v940 = vpop.f32.mrb[0].mxu0
        %941 = vmatprep.mubr.f32.mxu0 0.0
        %942 = vmatmul.mubr.f32.gmra.mrb[0].mxu0 %v733
        %v943 = vpop.f32.mrb[0].mxu0
        %v944 = vadd.f32 %v741, %v943
        %v945 = vpop.f32.mrb[0].mxu0
        %946 = vmatprep.mubr.f32.mxu0 0.0
        %947 = vmatmul.mubr.f32.gmra.mrb[0].mxu0 %v734
        %v948 = vpop.f32.mrb[0].mxu0
        %v949 = vadd.f32 %v741, %v948
        %v950 = vpop.f32.mrb[0].mxu0
        %951 = vmatprep.mubr.f32.mxu0 0.0
        %952 = vmatmul.mubr.f32.gmra.mrb[0].mxu0 %v735
        %v953 = vpop.f32.mrb[0].mxu0
        %v954 = vadd.f32 %v741, %v953
        %v955 = vpop.f32.mrb[0].mxu0
        %956 = vmatprep.mubr.f32.mxu0 0.0
        %957 = vmatmul.mubr.f32.gmra.mrb[0].mxu0 %v736
        %v958 = vpop.f32.mrb[0].mxu0
        %v959 = vadd.f32 %v741, %v958
        %v960 = vpop.f32.mrb[0].mxu0
        %961 = vmatprep.mubr.f32.mxu0 0.0
        %962 = vmatmul.mubr.f32.gmra.mrb[0].mxu0 %v737
        %v963 = vpop.f32.mrb[0].mxu0
        %v964 = vadd.f32 %v741, %v963
        %v965 = vpop.f32.mrb[0].mxu0
        %966 = vdwg.mxu0
        %967 = vst [vmem:[%s137] sm:$0xff] %v809
        %968 = vst [vmem:[%s137 + $0x8] sm:$0xff] %v814
        %969 = vst [vmem:[%s137 + $0x10] sm:$0xff] %v819
        %970 = vst [vmem:[%s137 + $0x18] sm:$0xff] %v824
        %971 = vst [vmem:[%s137 + $0x20] sm:$0xff] %v829
        %972 = vst [vmem:[%s137 + $0x28] sm:$0xff] %v834
        %973 = vst [vmem:[%s137 + $0x30] sm:$0xff] %v839
        %974 = vst [vmem:[%s137 + $0x38] sm:$0xff] %v844
        %975 = vst [vmem:[%s137 + $0x40] sm:$0xff] %v849
        %976 = vst [vmem:[%s137 + $0x48] sm:$0xff] %v854
        %977 = vst [vmem:[%s137 + $0x50] sm:$0xff] %v859
        %978 = vst [vmem:[%s137 + $0x58] sm:$0xff] %v864
        %979 = vst [vmem:[%s137 + $0x60] sm:$0xff] %v869
        %980 = vst [vmem:[%s137 + $0x68] sm:$0xff] %v874
        %981 = vst [vmem:[%s137 + $0x70] sm:$0xff] %v879
        %982 = vst [vmem:[%s137 + $0x78] sm:$0xff] %v884
        %983 = vst [vmem:[%s137 + $0x80] sm:$0xff] %v889
        %984 = vst [vmem:[%s137 + $0x88] sm:$0xff] %v894
        %985 = vst [vmem:[%s137 + $0x90] sm:$0xff] %v899
        %986 = vst [vmem:[%s137 + $0x98] sm:$0xff] %v904
        %987 = vst [vmem:[%s137 + $0xa0] sm:$0xff] %v909
        %988 = vst [vmem:[%s137 + $0xa8] sm:$0xff] %v914
        %989 = vst [vmem:[%s137 + $0xb0] sm:$0xff] %v919
        %990 = vst [vmem:[%s137 + $0xb8] sm:$0xff] %v924
        %991 = vst [vmem:[%s137 + $0xc0] sm:$0xff] %v929
        %992 = vst [vmem:[%s137 + $0xc8] sm:$0xff] %v934
        %993 = vst [vmem:[%s137 + $0xd0] sm:$0xff] %v939
        %994 = vst [vmem:[%s137 + $0xd8] sm:$0xff] %v944
        %995 = vst [vmem:[%s137 + $0xe0] sm:$0xff] %v949
        %996 = vst [vmem:[%s137 + $0xe8] sm:$0xff] %v954
        %997 = vst [vmem:[%s137 + $0xf0] sm:$0xff] %v959
        %998 = vst [vmem:[%s137 + $0xf8] sm:$0xff] %v964
        %s999 = sand.u32 %s71, 1
        %s1000 = scalar_lea.sflag [#allocation3], %s999
        %s1001 = sand.u32 %s71, 1
        %s1002 = smul.addr %s1001, 256
        %s1003 = scalar_lea.vmem [#allocation2], %s1002
        // Predicated region
        $region29: #{tpu_custom_call.1} parent=27 // pred_check
          %p1004 = pneg %p81
        $region30: #{tpu_custom_call.1} parent=27 // pred_check_branch
          %1006 = sbr.rel (%p1004) target = $region32
        $region31: #{tpu_custom_call.1} parent=27 // pred_region
          %s1007 = smul.u32 32, %s16
          %s1009 = ssub.s32 4096, 4096
          %1010 = vsyncadd %s1000, %s1009
          %s1011 = smul.addr %s1007, 128
          %s1012 = scalar_lea.hbm %s2, %s1011
          %s1013 = sshll.u32 %s1003, 4
          %s1014 = int_to_ptr.vmem [resolvable:$true] %s1013
          %1019 = dma.vmem_to_hbm [thread:$0]  %s1014, 4096, %s1012, %s1000, 128, 128, 8
        $region32: #{tpu_custom_call.1} parent=27 // pred_fallthru
          _
      $region28: #{tpu_custom_call.1} parent=5 // pred_fallthru
        _
      %p1020 = scmp.le.s32.totalorder 2, %s11
      // Predicated region
      $region33: #{tpu_custom_call.1} parent=5 // pred_check
        %p1021 = pneg %p1020
      $region34: #{tpu_custom_call.1} parent=5 // pred_check_branch
        %1023 = sbr.rel (%p1021) target = $region36
      $region35: #{tpu_custom_call.1} parent=5 // pred_region
        %s1024 = ssub.s32 %s11, 2
        // Predicated region
        $region37: #{tpu_custom_call.1} parent=35 // pred_check
          %p1025 = pneg %p87
        $region38: #{tpu_custom_call.1} parent=35 // pred_check_branch
          %1027 = sbr.rel (%p1025) target = $region40
        $region39: #{tpu_custom_call.1} parent=35 // pred_region
          %s1028 = sand.u32 %s72, 1
          %s1029 = scalar_lea.sflag [#allocation3], %s1028
          %s1030 = sand.u32 %s72, 1
          %s1031 = smul.addr %s1030, 256
          %s1032 = scalar_lea.vmem [#allocation2], %s1031
          %1033 = dma.done %s1029, 4096
        $region40: #{tpu_custom_call.1} parent=35 // pred_fallthru
          _
      $region36: #{tpu_custom_call.1} parent=5 // pred_fallthru
        _
    $region6: #{tpu_custom_call.1} parent=1 // loop_footer
      %s15 = sadd.s32 1, %s11
    $region7: #{tpu_custom_call.1} parent=1 // loop_footer_branch
      %10 = sbr.rel target = $region3
    $region8: #{tpu_custom_call.1} parent=1 // loop_exit
      _
    %1034 = vsyncpa [#allocation3], 1
    %s1035 = scalar_lea.sflag [#allocation3], 1
    %1036 = vsyncpa %s1035, 1

</llo_original>
